<compile_context>
chip_gen: v7x
topology: tpu7x:2x2x1
jax: 0.10.0
libtpu: 0.0.40
codegen_flags: <defaults>
</compile_context>

<pallas_src>
import functools

import jax
import jax.numpy as jnp
from jax.experimental import pallas as pl
from jax.experimental.pallas import tpu as pltpu


# --------------------------------------------------------------------------- #
# Pallas kernel (fused focal classification loss + per-bin token CE)
# --------------------------------------------------------------------------- #
def _set_crit_kernel(logits_ref, key_ref, bins_ref, tok_ref,
                     ce_out_ref, bbox_out_ref, *,
                     gamma, alpha, inv_num_boxes, inv_n_matched):
    """Fused SetCritToken losses.

    logits_ref  : [B*C, TQ]  model dtype (queries on lanes, batch*class on sublanes)
    key_ref     : [B*C, TQ]  i32   key==0  <=>  gt class of query == this row's class
    bins_ref    : [NB, K, N] model dtype (matched boxes N on lanes, vocab K on sublanes)
    tok_ref     : [NB, 1, N] i32   tokenized gt labels in [0, K)
    ce_out_ref  : [1]   f32 SMEM   sum(focal) / num_boxes   (also used as accumulator)
    bbox_out_ref: [NB]  f32 SMEM   mean-CE per bin / num_boxes
    """
    pid = pl.program_id(0)
    last = pl.num_programs(0) - 1

    @pl.when(pid == 0)
    def _init():
        ce_out_ref[0] = jnp.float32(0.0)

    # ---------------- sigmoid focal loss over this query tile ----------------
    x = logits_ref[...].astype(jnp.float32)                 # [B*C, TQ]
    t = (key_ref[...] == 0).astype(jnp.float32)             # one-hot, bg column dropped

    e = jnp.exp(-jnp.abs(x))                                # single exp, reused below
    inv_den = pl.reciprocal(1.0 + e, approx=True)           # EUP vrcp
    z = (1.0 - 2.0 * t) * x                                 # sigmoid(z) == t*(1-p)+(1-t)*p
    pt = jnp.where(z >= 0, inv_den, e * inv_den)
    alpha_w = (1.0 - alpha) + t * (2.0 * alpha - 1.0)
    if gamma == 2.0:
        focal_w = alpha_w * (pt * pt)                       # square: VPU mul, not pow
    else:
        focal_w = alpha_w * (pt ** gamma)
    bce = jnp.maximum(z, 0.0) + jnp.log(1.0 + e)            # == max(x,0) - x*t + log(1+e)
    ce_out_ref[0] += jnp.sum(focal_w * bce)                 # padded lanes contribute 0.0

    # ---------------- epilogue: finalize focal + per-bin token CE ------------
    @pl.when(pid == last)
    def _finalize():
        ce_out_ref[0] = ce_out_ref[0] * inv_num_boxes

        pred = bins_ref[...].astype(jnp.float32)            # [NB, K, N]
        nb, k, n = pred.shape
        ids = jax.lax.broadcasted_iota(jnp.int32, (nb, k, n), 1)
        onehot = (ids == tok_ref[...]).astype(jnp.float32)  # [NB, K, N]
        m = jnp.max(pred, axis=1, keepdims=True)            # sublane reduce over K
        lse = jnp.log(jnp.sum(jnp.exp(pred - m), axis=1, keepdims=True)) + m
        picked = jnp.sum(pred * onehot, axis=1, keepdims=True)
        ce = lse - picked                                   # [NB, 1, N]
        scale = inv_n_matched * inv_num_boxes
        for i in range(nb):                                 # NB is tiny & static
            bbox_out_ref[i] = jnp.sum(ce[i]) * scale


# --------------------------------------------------------------------------- #
# Pallas wrapper
# --------------------------------------------------------------------------- #
def set_crit_losses(pred_logits, gt_classes, matched_pred_bins, matched_gt_tokens,
                    num_boxes, gamma=2.0, alpha=0.25, tile_q=8192):
    """Returns (loss_ce, per_bin_ce); per_bin_ce[i] = mean CE of bin i / num_boxes."""
    B, Q, C = pred_logits.shape
    NB, N, K = matched_pred_bins.shape

    # 1-2 grid steps: whole (padded) Q axis in one tile when it fits.
    tq = min(int(tile_q), pl.cdiv(Q, 128) * 128)
    tq = max(128, (tq // 128) * 128)
    q_pad = pl.cdiv(Q, tq) * tq

    # Lane-dense + sublane-packed relayout: [B, Q, C] -> [B*C, Q].
    # TODO(synk): on v5e, emitting logits as [B, C, Q] upstream would avoid this
    # extra HBM pass; here the relayout stays in the wrapper.
    logits2d = jnp.transpose(pred_logits, (0, 2, 1)).reshape(B * C, Q)
    gt = gt_classes.astype(jnp.int32)                        # [B, Q]; 0 = background
    if q_pad != Q:
        # Pad logits with a large negative: focal_w * bce == 0 exactly for those lanes.
        logits2d = jnp.pad(logits2d, ((0, 0), (0, q_pad - Q)), constant_values=-100.0
                           ).astype(pred_logits.dtype)
        gt = jnp.pad(gt, ((0, 0), (0, q_pad - Q)))           # pad with background
    # one-hot key: key[b*C + c, q] == 0  <=>  gt[b, q] == c + 1
    key = (gt[:, None, :] - 1 - jnp.arange(C, dtype=jnp.int32)[None, :, None]
           ).reshape(B * C, q_pad)

    bins_t = jnp.transpose(matched_pred_bins, (0, 2, 1))     # [NB, K, N]
    tok = matched_gt_tokens.astype(jnp.int32)[:, None, :]    # [NB, 1, N]

    kernel = functools.partial(
        _set_crit_kernel, gamma=gamma, alpha=alpha,
        inv_num_boxes=1.0 / float(max(float(num_boxes), 1.0)),
        inv_n_matched=1.0 / float(max(N, 1)))

    loss_ce, per_bin = pl.pallas_call(
        kernel,
        out_shape=(jax.ShapeDtypeStruct((1,), jnp.float32),
                   jax.ShapeDtypeStruct((NB,), jnp.float32)),
        grid=(q_pad // tq,),
        in_specs=[
            pl.BlockSpec((B * C, tq), lambda q: (0, q)),     # pipelined over Q tiles
            pl.BlockSpec((B * C, tq), lambda q: (0, q)),
            pl.BlockSpec(memory_space=pltpu.MemorySpace.VMEM),   # small, resident
            pl.BlockSpec(memory_space=pltpu.MemorySpace.VMEM),
        ],
        out_specs=(pl.BlockSpec(memory_space=pltpu.MemorySpace.SMEM),
                   pl.BlockSpec(memory_space=pltpu.MemorySpace.SMEM)),
        compiler_params=pltpu.CompilerParams(
            dimension_semantics=("arbitrary",),              # grid axis is a reduction
            vmem_limit_bytes=32 * 1024 * 1024),              # <= v7x's 64 MiB physical
    )(logits2d, key, bins_t, tok)
    return loss_ce[0], per_bin


# --------------------------------------------------------------------------- #
# _preprocess glue + SetCritToken.forward equivalent
# --------------------------------------------------------------------------- #
def _gather_matched(pred_logits, pred_box_bins, src_idx, gt_cls, gt_tok):
    B, Q, _ = pred_logits.shape
    NB = pred_box_bins.shape[0]
    M = src_idx.shape[1]

    batch_idx = jnp.repeat(jnp.arange(B, dtype=jnp.int32), M)             # [B*M]
    src_flat = src_idx.reshape(-1).astype(jnp.int32)                      # [B*M]
    gt_classes = jnp.zeros((B, Q), jnp.int32).at[batch_idx, src_flat].set(
        gt_cls.reshape(-1).astype(jnp.int32) + 1)                         # [B, Q]
    matched_pred_bins = pred_box_bins[:, batch_idx, src_flat, :]          # [NB, B*M, K]
    matched_gt_tokens = gt_tok.reshape(NB, B * M)                         # [NB, B*M]
    # TODO(synk): assumes every matcher slot is a real match; a validity mask and the
    # true (dist-all-reduced, clamp>=1) matched count are needed for padded matchers.
    num_boxes = float(max(B * M, 1))
    return gt_classes, matched_pred_bins, matched_gt_tokens, num_boxes


def set_crit_token_forward(pred_dicts, gt_dicts, weight_dict,
                           losses=('loss_ce', 'loss_bbox'),
                           gamma=2.0, alpha=0.25):
    # TODO(synk): Hungarian matcher + box_coder.get_tokenized_labels are external
    # data-dependent modules; matched indices / tokenized gt labels are inputs here.
    pred_logits = pred_dicts['pred_logits']                  # [B, Q, C]
    pred_box_bins = pred_dicts['pred_box_bins']              # [NB, B, Q, K]
    gt_classes, matched_pred_bins, matched_gt_tokens, num_boxes = _gather_matched(
        pred_logits, pred_box_bins,
        gt_dicts['matched_src_idx'], gt_dicts['matched_gt_classes'],
        gt_dicts['matched_gt_box_tokens'])

    loss_ce, per_bin = set_crit_losses(
        pred_logits, gt_classes, matched_pred_bins, matched_gt_tokens,
        num_boxes, gamma=gamma, alpha=alpha)

    out = {}
    if 'loss_ce' in losses:
        out['loss_ce'] = loss_ce
    if 'loss_bbox' in losses:
        out['loss_bbox'] = jnp.sum(per_bin)
        out['loc_loss_elem'] = per_bin
    total = sum(out[k] * weight_dict[k] for k in out if k in weight_dict)
    out['loss'] = total
    return out


# --------------------------------------------------------------------------- #
# Pure-JAX reference (mirrors the PyTorch math) for correctness checking
# --------------------------------------------------------------------------- #
def _reference_losses(pred_logits, gt_classes, matched_pred_bins, matched_gt_tokens,
                      num_boxes, gamma=2.0, alpha=0.25):
    C = pred_logits.shape[-1]
    x = pred_logits.astype(jnp.float32)
    onehot = jax.nn.one_hot(gt_classes, C + 1, dtype=jnp.float32)[..., 1:]
    p = jax.nn.sigmoid(x)
    alpha_w = onehot * alpha + (1.0 - onehot) * (1.0 - alpha)
    pt = onehot * (1.0 - p) + (1.0 - onehot) * p
    bce = jnp.maximum(x, 0.0) - x * onehot + jnp.log(1.0 + jnp.exp(-jnp.abs(x)))
    loss_ce = jnp.sum(alpha_w * (pt ** gamma) * bce) / num_boxes

    logp = jax.nn.log_softmax(matched_pred_bins.astype(jnp.float32), axis=-1)
    picked = jnp.take_along_axis(
        logp, matched_gt_tokens[..., None].astype(jnp.int32), axis=-1)[..., 0]
    per_bin = -jnp.mean(picked, axis=-1) / num_boxes
    return loss_ce, per_bin


# --------------------------------------------------------------------------- #
if __name__ == "__main__":
    key = jax.random.PRNGKey(0)
    B, Q, C = 2, 8, 4        # batch, queries, num fg classes
    NB, K, M = 3, 12, 3      # regression bins, token vocab per bin, matches per sample

    k1, k2, k3, k4 = jax.random.split(key, 4)
    pred_logits = jax.random.normal(k1, (B, Q, C), jnp.float32)
    pred_box_bins = jax.random.normal(k2, (NB, B, Q, K), jnp.float32)
    matched_src_idx = jnp.array([[0, 3, 5], [1, 2, 7]], jnp.int32)
    matched_gt_classes = jax.random.randint(k3, (B, M), 0, C, jnp.int32)
    matched_gt_box_tokens = jax.random.randint(k4, (NB, B, M), 0, K, jnp.int32)

    weight_dict = {'loss_ce': 1.0, 'loss_bbox': 2.0}

    out = set_crit_token_forward(
        {'pred_logits': pred_logits, 'pred_box_bins': pred_box_bins},
        {'matched_src_idx': matched_src_idx,
         'matched_gt_classes': matched_gt_classes,
         'matched_gt_box_tokens': matched_gt_box_tokens},
        weight_dict)
    jax.block_until_ready(out['loss'])

    # correctness check against pure-JAX reference of the same math
    gt_classes, mp_bins, mp_tok, num_boxes = _gather_matched(
        pred_logits, pred_box_bins, matched_src_idx,
        matched_gt_classes, matched_gt_box_tokens)
    ref_ce, ref_per_bin = _reference_losses(
        pred_logits, gt_classes, mp_bins, mp_tok, num_boxes)

    # loss_ce uses an approximate EUP reciprocal for sigmoid -> slightly looser rtol.
    ok = (jnp.allclose(out['loss_ce'], ref_ce, rtol=2e-2, atol=1e-5) and
          jnp.allclose(out['loc_loss_elem'], ref_per_bin, rtol=1e-3, atol=1e-5) and
          jnp.allclose(out['loss_bbox'], jnp.sum(ref_per_bin), rtol=1e-3, atol=1e-5))
    if not bool(ok):
        raise AssertionError(
            f"mismatch: ce {out['loss_ce']} vs {ref_ce}, "
            f"per_bin {out['loc_loss_elem']} vs {ref_per_bin}")
    print("KERNEL_OK")
</pallas_src>

<mosaic_0001>
module attributes {stable_mosaic.version = 11 : i64} {
  func.func @_set_crit_kernel(%arg0: i32, %arg1: memref<8x128xf32, #tpu.memory_space<vmem>>, %arg2: memref<8x128xi32, #tpu.memory_space<vmem>>, %arg3: memref<3x12x6xf32, #tpu.memory_space<vmem>>, %arg4: memref<3x1x6xi32, #tpu.memory_space<vmem>>, %arg5: memref<1xf32, #tpu.memory_space<smem>>, %arg6: memref<3xf32, #tpu.memory_space<smem>>) attributes {dimension_semantics = [#tpu.dimension_semantics<arbitrary>], iteration_bounds = array<i64: 1>, scalar_prefetch = 0 : i64, scratch_operands = 0 : i64, tpu.core_type = #tpu.core_type<tc>, window_params = [{transform_indices = @transform_0, window_bounds = array<i64: 8, 128>}, {transform_indices = @transform_1, window_bounds = array<i64: 8, 128>}, {pipeline_mode = #tpu.pipeline_mode<synchronous>, transform_indices = @transform_2, window_bounds = array<i64: 3, 12, 6>}, {pipeline_mode = #tpu.pipeline_mode<synchronous>, transform_indices = @transform_3, window_bounds = array<i64: 3, 1, 6>}, {transform_indices = @transform_4, window_bounds = array<i64: 1>}, {transform_indices = @transform_5, window_bounds = array<i64: 3>}]} {
    %c0_i32 = arith.constant 0 : i32
    %0 = arith.cmpi eq, %arg0, %c0_i32 : i32
    %1 = arith.extui %0 : i1 to i32
    %c0_i32_0 = arith.constant 0 : i32
    %2 = arith.cmpi ne, %1, %c0_i32_0 : i32
    scf.if %2 {
      %cst_18 = arith.constant 0.000000e+00 : f32
      %c0_19 = arith.constant 0 : index
      %48 = memref.load %arg5[%c0_19] : memref<1xf32, #tpu.memory_space<smem>>
      memref.store %cst_18, %arg5[%c0_19] : memref<1xf32, #tpu.memory_space<smem>>
    } else {
    }
    %c0 = arith.constant 0 : index
    %c0_1 = arith.constant 0 : index
    %3 = vector.load %arg1[%c0, %c0_1] : memref<8x128xf32, #tpu.memory_space<vmem>>, vector<8x128xf32>
    %c0_2 = arith.constant 0 : index
    %c0_3 = arith.constant 0 : index
    %4 = vector.load %arg2[%c0_2, %c0_3] : memref<8x128xi32, #tpu.memory_space<vmem>>, vector<8x128xi32>
    %c0_i32_4 = arith.constant 0 : i32
    %5 = vector.broadcast %c0_i32_4 : i32 to vector<8x128xi32>
    %6 = arith.cmpi eq, %4, %5 : vector<8x128xi32>
    %7 = arith.extui %6 : vector<8x128xi1> to vector<8x128xi32>
    %8 = arith.sitofp %7 : vector<8x128xi32> to vector<8x128xf32>
    %9 = math.absf %3 : vector<8x128xf32>
    %cst = arith.constant 0.000000e+00 : f32
    %10 = vector.broadcast %cst : f32 to vector<8x128xf32>
    %11 = arith.subf %10, %9 : vector<8x128xf32>
    %12 = math.exp %11 : vector<8x128xf32>
    %cst_5 = arith.constant 1.000000e+00 : f32
    %13 = vector.broadcast %cst_5 : f32 to vector<8x128xf32>
    %14 = arith.addf %13, %12 : vector<8x128xf32>
    %15 = tpu.reciprocal %14 {approx = true} : vector<8x128xf32> -> vector<8x128xf32>
    %cst_6 = arith.constant 2.000000e+00 : f32
    %16 = vector.broadcast %cst_6 : f32 to vector<8x128xf32>
    %17 = arith.mulf %16, %8 : vector<8x128xf32>
    %cst_7 = arith.constant 1.000000e+00 : f32
    %18 = vector.broadcast %cst_7 : f32 to vector<8x128xf32>
    %19 = arith.subf %18, %17 : vector<8x128xf32>
    %20 = arith.mulf %19, %3 : vector<8x128xf32>
    %cst_8 = arith.constant 0.000000e+00 : f32
    %21 = vector.broadcast %cst_8 : f32 to vector<8x128xf32>
    %22 = arith.cmpf oge, %20, %21 : vector<8x128xf32>
    %23 = arith.mulf %12, %15 : vector<8x128xf32>
    %24 = arith.select %22, %15, %23 : vector<8x128xi1>, vector<8x128xf32>
    %cst_9 = arith.constant -5.000000e-01 : f32
    %25 = vector.broadcast %cst_9 : f32 to vector<8x128xf32>
    %26 = arith.mulf %8, %25 : vector<8x128xf32>
    %cst_10 = arith.constant 7.500000e-01 : f32
    %27 = vector.broadcast %cst_10 : f32 to vector<8x128xf32>
    %28 = arith.addf %27, %26 : vector<8x128xf32>
    %29 = arith.mulf %24, %24 : vector<8x128xf32>
    %30 = arith.mulf %28, %29 : vector<8x128xf32>
    %cst_11 = arith.constant 0.000000e+00 : f32
    %31 = vector.broadcast %cst_11 : f32 to vector<8x128xf32>
    %32 = arith.maximumf %20, %31 : vector<8x128xf32>
    %cst_12 = arith.constant 1.000000e+00 : f32
    %33 = vector.broadcast %cst_12 : f32 to vector<8x128xf32>
    %34 = arith.addf %33, %12 : vector<8x128xf32>
    %35 = math.log %34 : vector<8x128xf32>
    %36 = arith.addf %32, %35 : vector<8x128xf32>
    %c0_13 = arith.constant 0 : index
    %37 = memref.load %arg5[%c0_13] : memref<1xf32, #tpu.memory_space<smem>>
    %38 = arith.mulf %30, %36 : vector<8x128xf32>
    %39 = vector.shape_cast %38 : vector<8x128xf32> to vector<1x8x128xf32>
    %cst_14 = arith.constant dense<0.000000e+00> : vector<1xf32>
    %40 = vector.multi_reduction <add>, %39, %cst_14 [1, 2] : vector<1x8x128xf32> to vector<1xf32>
    %41 = vector.shape_cast %40 : vector<1xf32> to vector<1x1x1xf32>
    %42 = vector.extract %41[0, 0, 0] : f32 from vector<1x1x1xf32>
    %43 = arith.addf %37, %42 : f32
    %c0_15 = arith.constant 0 : index
    %44 = memref.load %arg5[%c0_15] : memref<1xf32, #tpu.memory_space<smem>>
    memref.store %43, %arg5[%c0_15] : memref<1xf32, #tpu.memory_space<smem>>
    %c0_i32_16 = arith.constant 0 : i32
    %45 = arith.cmpi eq, %arg0, %c0_i32_16 : i32
    %46 = arith.extui %45 : i1 to i32
    %c0_i32_17 = arith.constant 0 : i32
    %47 = arith.cmpi ne, %46, %c0_i32_17 : i32
    scf.if %47 {
      %c0_18 = arith.constant 0 : index
      %48 = memref.load %arg5[%c0_18] : memref<1xf32, #tpu.memory_space<smem>>
      %cst_19 = arith.constant 0.166666672 : f32
      %49 = arith.mulf %48, %cst_19 : f32
      %c0_20 = arith.constant 0 : index
      %50 = memref.load %arg5[%c0_20] : memref<1xf32, #tpu.memory_space<smem>>
      memref.store %49, %arg5[%c0_20] : memref<1xf32, #tpu.memory_space<smem>>
      %c0_21 = arith.constant 0 : index
      %c0_22 = arith.constant 0 : index
      %c0_23 = arith.constant 0 : index
      %51 = vector.load %arg3[%c0_21, %c0_22, %c0_23] : memref<3x12x6xf32, #tpu.memory_space<vmem>>, vector<3x12x6xf32>
      %52 = tpu.iota {dimensions = array<i32: 1>} : vector<3x12x6xi32>
      %c0_24 = arith.constant 0 : index
      %c0_25 = arith.constant 0 : index
      %c0_26 = arith.constant 0 : index
      %53 = vector.load %arg4[%c0_24, %c0_25, %c0_26] : memref<3x1x6xi32, #tpu.memory_space<vmem>>, vector<3x1x6xi32>
      %54 = vector.broadcast %53 : vector<3x1x6xi32> to vector<3x12x6xi32>
      %55 = arith.cmpi eq, %52, %54 : vector<3x12x6xi32>
      %56 = arith.extui %55 : vector<3x12x6xi1> to vector<3x12x6xi32>
      %57 = arith.sitofp %56 : vector<3x12x6xi32> to vector<3x12x6xf32>
      %cst_27 = arith.constant dense<0xFF800000> : vector<3x6xf32>
      %58 = vector.multi_reduction <maximumf>, %51, %cst_27 [1] : vector<3x12x6xf32> to vector<3x6xf32>
      %59 = vector.shape_cast %58 : vector<3x6xf32> to vector<3x1x6xf32>
      %60 = vector.broadcast %59 : vector<3x1x6xf32> to vector<3x12x6xf32>
      %61 = arith.subf %51, %60 : vector<3x12x6xf32>
      %62 = math.exp %61 : vector<3x12x6xf32>
      %cst_28 = arith.constant dense<0.000000e+00> : vector<3x6xf32>
      %63 = vector.multi_reduction <add>, %62, %cst_28 [1] : vector<3x12x6xf32> to vector<3x6xf32>
      %64 = vector.shape_cast %63 : vector<3x6xf32> to vector<3x1x6xf32>
      %65 = math.log %64 : vector<3x1x6xf32>
      %66 = arith.addf %65, %59 : vector<3x1x6xf32>
      %67 = arith.mulf %51, %57 : vector<3x12x6xf32>
      %cst_29 = arith.constant dense<0.000000e+00> : vector<3x6xf32>
      %68 = vector.multi_reduction <add>, %67, %cst_29 [1] : vector<3x12x6xf32> to vector<3x6xf32>
      %69 = vector.shape_cast %68 : vector<3x6xf32> to vector<3x1x6xf32>
      %70 = arith.subf %66, %69 : vector<3x1x6xf32>
      %71 = vector.extract_strided_slice %70 {offsets = [0, 0, 0], sizes = [1, 1, 6], strides = [1, 1, 1]} : vector<3x1x6xf32> to vector<1x1x6xf32>
      %72 = vector.shape_cast %71 : vector<1x1x6xf32> to vector<1x6xf32>
      %73 = vector.shape_cast %72 : vector<1x6xf32> to vector<1x1x6xf32>
      %cst_30 = arith.constant dense<0.000000e+00> : vector<1xf32>
      %74 = vector.multi_reduction <add>, %73, %cst_30 [1, 2] : vector<1x1x6xf32> to vector<1xf32>
      %75 = vector.shape_cast %74 : vector<1xf32> to vector<1x1x1xf32>
      %76 = vector.extract %75[0, 0, 0] : f32 from vector<1x1x1xf32>
      %cst_31 = arith.constant 0.027777778 : f32
      %77 = arith.mulf %76, %cst_31 : f32
      %c0_32 = arith.constant 0 : index
      %78 = memref.load %arg6[%c0_32] : memref<3xf32, #tpu.memory_space<smem>>
      memref.store %77, %arg6[%c0_32] : memref<3xf32, #tpu.memory_space<smem>>
      %79 = vector.extract_strided_slice %70 {offsets = [1, 0, 0], sizes = [1, 1, 6], strides = [1, 1, 1]} : vector<3x1x6xf32> to vector<1x1x6xf32>
      %80 = vector.shape_cast %79 : vector<1x1x6xf32> to vector<1x6xf32>
      %81 = vector.shape_cast %80 : vector<1x6xf32> to vector<1x1x6xf32>
      %cst_33 = arith.constant dense<0.000000e+00> : vector<1xf32>
      %82 = vector.multi_reduction <add>, %81, %cst_33 [1, 2] : vector<1x1x6xf32> to vector<1xf32>
      %83 = vector.shape_cast %82 : vector<1xf32> to vector<1x1x1xf32>
      %84 = vector.extract %83[0, 0, 0] : f32 from vector<1x1x1xf32>
      %cst_34 = arith.constant 0.027777778 : f32
      %85 = arith.mulf %84, %cst_34 : f32
      %c1 = arith.constant 1 : index
      %86 = memref.load %arg6[%c1] : memref<3xf32, #tpu.memory_space<smem>>
      memref.store %85, %arg6[%c1] : memref<3xf32, #tpu.memory_space<smem>>
      %87 = vector.extract_strided_slice %70 {offsets = [2, 0, 0], sizes = [1, 1, 6], strides = [1, 1, 1]} : vector<3x1x6xf32> to vector<1x1x6xf32>
      %88 = vector.shape_cast %87 : vector<1x1x6xf32> to vector<1x6xf32>
      %89 = vector.shape_cast %88 : vector<1x6xf32> to vector<1x1x6xf32>
      %cst_35 = arith.constant dense<0.000000e+00> : vector<1xf32>
      %90 = vector.multi_reduction <add>, %89, %cst_35 [1, 2] : vector<1x1x6xf32> to vector<1xf32>
      %91 = vector.shape_cast %90 : vector<1xf32> to vector<1x1x1xf32>
      %92 = vector.extract %91[0, 0, 0] : f32 from vector<1x1x1xf32>
      %cst_36 = arith.constant 0.027777778 : f32
      %93 = arith.mulf %92, %cst_36 : f32
      %c2 = arith.constant 2 : index
      %94 = memref.load %arg6[%c2] : memref<3xf32, #tpu.memory_space<smem>>
      memref.store %93, %arg6[%c2] : memref<3xf32, #tpu.memory_space<smem>>
    } else {
    }
    return
  }
  func.func @transform_0(%arg0: i32) -> (i32, i32) {
    %c0_i32 = arith.constant 0 : i32
    %c0_i32_0 = arith.constant 0 : i32
    return %c0_i32, %arg0 : i32, i32
  }
  func.func @transform_1(%arg0: i32) -> (i32, i32) {
    %c0_i32 = arith.constant 0 : i32
    %c0_i32_0 = arith.constant 0 : i32
    return %c0_i32, %arg0 : i32, i32
  }
  func.func @transform_2(%arg0: i32) -> (i32, i32, i32) {
    %c0_i32 = arith.constant 0 : i32
    %c0_i32_0 = arith.constant 0 : i32
    %c0_i32_1 = arith.constant 0 : i32
    %c0_i32_2 = arith.constant 0 : i32
    return %c0_i32, %c0_i32_0, %c0_i32_1 : i32, i32, i32
  }
  func.func @transform_3(%arg0: i32) -> (i32, i32, i32) {
    %c0_i32 = arith.constant 0 : i32
    %c0_i32_0 = arith.constant 0 : i32
    %c0_i32_1 = arith.constant 0 : i32
    %c0_i32_2 = arith.constant 0 : i32
    return %c0_i32, %c0_i32_0, %c0_i32_1 : i32, i32, i32
  }
  func.func @transform_4(%arg0: i32) -> i32 {
    %c0_i32 = arith.constant 0 : i32
    %c0_i32_0 = arith.constant 0 : i32
    return %c0_i32 : i32
  }
  func.func @transform_5(%arg0: i32) -> i32 {
    %c0_i32 = arith.constant 0 : i32
    %c0_i32_0 = arith.constant 0 : i32
    return %c0_i32 : i32
  }
}

</mosaic_0001>

<llo_original>
// kernel: tpu_custom_call.1
$region0: #{tpu_custom_call.1}
  #allocation0 [shape = 'u32[]', space=smem, size = 0x4, offset = 0x4, fixed_abs, tag = 'smem constant byte address 0x4 - core index']
  #allocation1 [shape = 'u32[144,128]{1,0:T(1,128)}', space=vmem, size = 0x12000, scoped, tag = 'internal scratch']
  %s0 = inlined_call_operand.vmem [shape: f32[8,128], index: 0, kind: input, shape index: {}]
  %s1 = inlined_call_operand.vmem [shape: s32[8,128], index: 1, kind: input, shape index: {}]
  %s2 = inlined_call_operand.vmem [shape: f32[3,12,6], index: 2, kind: input, shape index: {}]
  %s3 = inlined_call_operand.vmem [shape: s32[3,1,6], index: 3, kind: input, shape index: {}]
  %s4 = inlined_call_operand.hbm [shape: f32[1], index: 4, kind: output, shape index: {0}]
  %s5 = inlined_call_operand.hbm [shape: f32[3], index: 5, kind: output, shape index: {1}]
  %6 = xla_tuple %s4, %s5
  %s7 = sld [smem:[#allocation0]]
  $region42: #{tpu_custom_call.1} parent=0
    _
  %s9 = ssub.s32 1, %s7
  %s10 = scalar_select 0, %s9, %s7
  $region1: #{tpu_custom_call.1} parent=0
    #allocation2 [shape = 'u8[512]{0}', space=smem, size = 0x200, scoped, tag = 'output window, operand 0, single buffered']
    #allocation3 [shape = 's32[1]{0}', space=sflag, size = 0x4, scoped, tag = 'scoped memory for tpu_custom_call.1']
    #allocation4 [shape = 'u8[512]{0}', space=smem, size = 0x200, scoped, tag = 'output window, operand 1, single buffered']
    #allocation5 [shape = 's32[1]{0}', space=sflag, size = 0x4, scoped, tag = 'scoped memory for tpu_custom_call.1']
    %11 = vsyncpa [#allocation3], 0
    %12 = vsyncpa [#allocation5], 0
    // Predicated region
    $region2: #{tpu_custom_call.1} parent=1 // pred_check
      _
    $region3: #{tpu_custom_call.1} parent=1 // pred_check_branch
      %14 = sbr.rel (0) target = $region5
    $region4: #{tpu_custom_call.1} parent=1 // pred_region
      _
    $region5: #{tpu_custom_call.1} parent=1 // pred_fallthru
      _
    // Predicated region
    $region6: #{tpu_custom_call.1} parent=1 // pred_check
      _
    $region7: #{tpu_custom_call.1} parent=1 // pred_check_branch
      %16 = sbr.rel (0) target = $region9
    $region8: #{tpu_custom_call.1} parent=1 // pred_region
      _
    $region9: #{tpu_custom_call.1} parent=1 // pred_fallthru
      _
    // Predicated region
    $region10: #{tpu_custom_call.1} parent=1 // pred_check
      _
    $region11: #{tpu_custom_call.1} parent=1 // pred_check_branch
      %18 = sbr.rel (0) target = $region13
    $region12: #{tpu_custom_call.1} parent=1 // pred_region
      _
    $region13: #{tpu_custom_call.1} parent=1 // pred_fallthru
      _
    // Predicated region
    $region14: #{tpu_custom_call.1} parent=1 // pred_check
      _
    $region15: #{tpu_custom_call.1} parent=1 // pred_check_branch
      %20 = sbr.rel (0) target = $region17
    $region16: #{tpu_custom_call.1} parent=1 // pred_region
      _
    $region17: #{tpu_custom_call.1} parent=1 // pred_fallthru
      _
    %p21 = scmp.eq.s32.totalorder 0, 0
    // Predicated region
    $region18: #{tpu_custom_call.1} parent=1 // pred_check
      %p22 = pneg %p21
    $region19: #{tpu_custom_call.1} parent=1 // pred_check_branch
      %24 = sbr.rel (%p22) target = $region21
    $region20: #{tpu_custom_call.1} parent=1 // pred_region
      %s25 = scalar_lea.smem [#allocation2], 0
      %26 = sst [smem:[%s25]] 0.0
    $region21: #{tpu_custom_call.1} parent=1 // pred_fallthru
      _
    %v27 = vld [vmem:[%s0] sm:$0xff]
    %v28 = vld [vmem:[%s1] sm:$0xff]
    %vm29 = vcmp.eq.s32.totalorder %v28, 0
    %v30 = vsel %vm29, 1, 0
    %v31 = vcvt.s32.f32 %v30
    %v32 = vand.u32 2147483647, %v27
    %v33 = vsub.f32 0.0, %v32
    %v34 = vmul.f32 %v33, 1.442695
    %v35 = vpow.pop %v34
    %v36 = vadd.f32 %v35, 1.0
    %v37 = vrcp.pop %v36
    %v38 = vmul.f32 %v31, 2.0
    %v39 = vsub.f32 1.0, %v38
    %v40 = vmul.f32 %v39, %v27
    %vm41 = vcmp.ge.f32.partialorder %v40, 0.0
    %v42 = vmul.f32 %v35, %v37
    %v43 = vsel %vm41, %v37, %v42
    %v44 = vmul.f32 %v31, -0.5
    %v45 = vadd.f32 %v44, 0.75
    %v46 = vmul.f32 %v43, %v43
    %v47 = vmul.f32 %v45, %v46
    %v48 = vmax.f32 %v40, 0.0
    %v49 = vlog2.pop %v36
    %v50 = vmul.f32 %v49, 0.6931472
    %v51 = vadd.f32 %v48, %v50
    %s52 = sld [smem:[#allocation2]]
    %v53 = vmul.f32 %v47, %v51
    %54 = vadd.xlane.f32.xlu0 %v53
    %v55 = vpop.xlane.xlu0 %54
    %v56 = vrot.slane %v55, 4
    %v57 = vadd.f32 %v55, %v56
    %v58 = vrot.slane %v57, 2
    %v59 = vadd.f32 %v57, %v58
    %v60 = vrot.slane %v59, 1
    %v61 = vadd.f32 %v59, %v60
    %s62 = vtos %v61
    %s63 = sadd.f32 %s52, %s62
    %s64 = scalar_lea.smem [#allocation2], 0
    %65 = sst [smem:[%s64]] %s63
    // Predicated region
    $region22: #{tpu_custom_call.1} parent=1 // pred_check
      %p66 = pneg %p21
    $region23: #{tpu_custom_call.1} parent=1 // pred_check_branch
      %68 = sbr.rel (%p66) target = $region25
    $region24: #{tpu_custom_call.1} parent=1 // pred_region
      %s69 = sld [smem:[#allocation2]]
      %s70 = smul.f32 %s69, 0.16666667
      %71 = sst [smem:[%s64]] %s70
      %v72 = vld [vmem:[%s2] sm:$0xff]
      %v73 = vld [vmem:[%s2 + $0x8] sm:$0xf]
      %v74 = vld [vmem:[%s2 + $0x10] sm:$0xff]
      %v75 = vld [vmem:[%s2 + $0x18] sm:$0xf]
      %v76 = vld [vmem:[%s2 + $0x20] sm:$0xff]
      %v77 = vld [vmem:[%s2 + $0x28] sm:$0xf]
      %v78 = vlaneseq
      %v79 = vshrl.u32 %v78, 7
      %v80 = vadd.s32 %v79, 8
      %v81 = vld [vmem:[%s3] sm:$0x1]
      %v82 = vld [vmem:[%s3 + $0x1] sm:$0x1]
      %v83 = vld [vmem:[%s3 + $0x2] sm:$0x1]
      %v84 = vlaneseq
      %v85 = vshrl.u32 %v84, 7
      %v86 = vsub.s32 0, %v85
      %v87 = vrot.slane %v81, %v86
      %v88 = vlaneseq
      %v89 = vshrl.u32 %v88, 7
      %v90 = vsub.s32 0, %v89
      %v91 = vrot.slane %v82, %v90
      %v92 = vlaneseq
      %v93 = vshrl.u32 %v92, 7
      %v94 = vsub.s32 0, %v93
      %v95 = vrot.slane %v83, %v94
      %vm96 = vcmp.eq.s32.totalorder %v79, %v87
      %vm97 = vcmp.eq.s32.totalorder %v80, %v87
      %vm98 = vcmp.eq.s32.totalorder %v79, %v91
      %vm99 = vcmp.eq.s32.totalorder %v80, %v91
      %vm100 = vcmp.eq.s32.totalorder %v79, %v95
      %vm101 = vcmp.eq.s32.totalorder %v80, %v95
      %v102 = vsel %vm96, 1, 0
      %v103 = vsel %vm97, 1, 0
      %v104 = vsel %vm98, 1, 0
      %v105 = vsel %vm99, 1, 0
      %v106 = vsel %vm100, 1, 0
      %v107 = vsel %vm101, 1, 0
      %v108 = vcvt.s32.f32 %v102
      %v109 = vcvt.s32.f32 %v103
      %v110 = vcvt.s32.f32 %v104
      %v111 = vcvt.s32.f32 %v105
      %v112 = vcvt.s32.f32 %v106
      %v113 = vcvt.s32.f32 %v107
      %vm114 = vcmask 48128
      %v115 = vsel %vm114, %v72, -inf
      %vm116 = vcmask 44032
      %v117 = vsel %vm116, %v73, -inf
      %v118 = vmax.f32 %v115, %v117
      %v119 = vrot.slane %v118, 4
      %v120 = vmax.f32 %v118, %v119
      %v121 = vrot.slane %v120, 2
      %v122 = vmax.f32 %v120, %v121
      %v123 = vrot.slane %v122, 1
      %v124 = vmax.f32 %v122, %v123
      %v125 = vsel %vm114, %v74, -inf
      %v126 = vsel %vm116, %v75, -inf
      %v127 = vmax.f32 %v125, %v126
      %v128 = vrot.slane %v127, 4
      %v129 = vmax.f32 %v127, %v128
      %v130 = vrot.slane %v129, 2
      %v131 = vmax.f32 %v129, %v130
      %v132 = vrot.slane %v131, 1
      %v133 = vmax.f32 %v131, %v132
      %v134 = vsel %vm114, %v76, -inf
      %v135 = vsel %vm116, %v77, -inf
      %v136 = vmax.f32 %v134, %v135
      %v137 = vrot.slane %v136, 4
      %v138 = vmax.f32 %v136, %v137
      %v139 = vrot.slane %v138, 2
      %v140 = vmax.f32 %v138, %v139
      %v141 = vrot.slane %v140, 1
      %v142 = vmax.f32 %v140, %v141
      %v143 = vsub.f32 %v72, %v124
      %v144 = vsub.f32 %v73, %v124
      %v145 = vsub.f32 %v74, %v133
      %v146 = vsub.f32 %v75, %v133
      %v147 = vsub.f32 %v76, %v142
      %v148 = vsub.f32 %v77, %v142
      %v149 = vmul.f32 %v143, 1.442695
      %v150 = vpow.pop %v149
      %v151 = vmul.f32 %v144, 1.442695
      %v152 = vpow.pop %v151
      %v153 = vmul.f32 %v145, 1.442695
      %v154 = vpow.pop %v153
      %v155 = vmul.f32 %v146, 1.442695
      %v156 = vpow.pop %v155
      %v157 = vmul.f32 %v147, 1.442695
      %v158 = vpow.pop %v157
      %v159 = vmul.f32 %v148, 1.442695
      %v160 = vpow.pop %v159
      %v161 = vsel %vm114, %v150, 0.0
      %v162 = vsel %vm116, %v152, 0.0
      %v163 = vadd.f32 %v161, %v162
      %v164 = vrot.slane %v163, 4
      %v165 = vadd.f32 %v163, %v164
      %v166 = vrot.slane %v165, 2
      %v167 = vadd.f32 %v165, %v166
      %v168 = vrot.slane %v167, 1
      %v169 = vadd.f32 %v167, %v168
      %v170 = vsel %vm114, %v154, 0.0
      %v171 = vsel %vm116, %v156, 0.0
      %v172 = vadd.f32 %v170, %v171
      %v173 = vrot.slane %v172, 4
      %v174 = vadd.f32 %v172, %v173
      %v175 = vrot.slane %v174, 2
      %v176 = vadd.f32 %v174, %v175
      %v177 = vrot.slane %v176, 1
      %v178 = vadd.f32 %v176, %v177
      %v179 = vsel %vm114, %v158, 0.0
      %v180 = vsel %vm116, %v160, 0.0
      %v181 = vadd.f32 %v179, %v180
      %v182 = vrot.slane %v181, 4
      %v183 = vadd.f32 %v181, %v182
      %v184 = vrot.slane %v183, 2
      %v185 = vadd.f32 %v183, %v184
      %v186 = vrot.slane %v185, 1
      %v187 = vadd.f32 %v185, %v186
      %v188 = vlog2.pop %v169
      %v189 = vmul.f32 %v188, 0.6931472
      %v190 = vlog2.pop %v178
      %v191 = vmul.f32 %v190, 0.6931472
      %v192 = vlog2.pop %v187
      %v193 = vmul.f32 %v192, 0.6931472
      %v194 = vadd.f32 %v189, %v124
      %v195 = vadd.f32 %v191, %v133
      %v196 = vadd.f32 %v193, %v142
      %v197 = vmul.f32 %v72, %v108
      %v198 = vmul.f32 %v73, %v109
      %v199 = vmul.f32 %v74, %v110
      %v200 = vmul.f32 %v75, %v111
      %v201 = vmul.f32 %v76, %v112
      %v202 = vmul.f32 %v77, %v113
      %v203 = vsel %vm114, %v197, 0.0
      %v204 = vsel %vm116, %v198, 0.0
      %v205 = vadd.f32 %v203, %v204
      %v206 = vrot.slane %v205, 4
      %v207 = vadd.f32 %v205, %v206
      %v208 = vrot.slane %v207, 2
      %v209 = vadd.f32 %v207, %v208
      %v210 = vrot.slane %v209, 1
      %v211 = vadd.f32 %v209, %v210
      %v212 = vsel %vm114, %v199, 0.0
      %v213 = vsel %vm116, %v200, 0.0
      %v214 = vadd.f32 %v212, %v213
      %v215 = vrot.slane %v214, 4
      %v216 = vadd.f32 %v214, %v215
      %v217 = vrot.slane %v216, 2
      %v218 = vadd.f32 %v216, %v217
      %v219 = vrot.slane %v218, 1
      %v220 = vadd.f32 %v218, %v219
      %v221 = vsel %vm114, %v201, 0.0
      %v222 = vsel %vm116, %v202, 0.0
      %v223 = vadd.f32 %v221, %v222
      %v224 = vrot.slane %v223, 4
      %v225 = vadd.f32 %v223, %v224
      %v226 = vrot.slane %v225, 2
      %v227 = vadd.f32 %v225, %v226
      %v228 = vrot.slane %v227, 1
      %v229 = vadd.f32 %v227, %v228
      %v230 = vsub.f32 %v194, %v211
      %v231 = vsub.f32 %v195, %v220
      %v232 = vsub.f32 %v196, %v229
      %vm233 = vcmask 40960
      %v234 = vsel %vm233, %v230, 0.0
      %235 = vadd.xlane.f32.xlu0 %v234
      %v236 = vpop.xlane.xlu0 %235
      %v237 = vrot.slane %v236, 4
      %v238 = vadd.f32 %v236, %v237
      %v239 = vrot.slane %v238, 2
      %v240 = vadd.f32 %v238, %v239
      %v241 = vrot.slane %v240, 1
      %v242 = vadd.f32 %v240, %v241
      %s243 = vtos %v242
      %s244 = smul.f32 %s243, 0.027777778
      %s245 = scalar_lea.smem [#allocation4], 0
      %246 = sst [smem:[%s245]] %s244
      %v247 = vsel %vm233, %v231, 0.0
      %248 = vadd.xlane.f32.xlu0 %v247
      %v249 = vpop.xlane.xlu0 %248
      %v250 = vrot.slane %v249, 4
      %v251 = vadd.f32 %v249, %v250
      %v252 = vrot.slane %v251, 2
      %v253 = vadd.f32 %v251, %v252
      %v254 = vrot.slane %v253, 1
      %v255 = vadd.f32 %v253, %v254
      %s256 = vtos %v255
      %s257 = smul.f32 %s256, 0.027777778
      %s258 = scalar_lea.smem [#allocation4], 1
      %259 = sst [smem:[%s258]] %s257
      %v260 = vsel %vm233, %v232, 0.0
      %261 = vadd.xlane.f32.xlu0 %v260
      %v262 = vpop.xlane.xlu0 %261
      %v263 = vrot.slane %v262, 4
      %v264 = vadd.f32 %v262, %v263
      %v265 = vrot.slane %v264, 2
      %v266 = vadd.f32 %v264, %v265
      %v267 = vrot.slane %v266, 1
      %v268 = vadd.f32 %v266, %v267
      %s269 = vtos %v268
      %s270 = smul.f32 %s269, 0.027777778
      %s271 = scalar_lea.smem [#allocation4], 2
      %272 = sst [smem:[%s271]] %s270
    $region25: #{tpu_custom_call.1} parent=1 // pred_fallthru
      _
    // Predicated region
    $region26: #{tpu_custom_call.1} parent=1 // pred_check
      _
    $region27: #{tpu_custom_call.1} parent=1 // pred_check_branch
      %274 = sbr.rel (0) target = $region29
    $region28: #{tpu_custom_call.1} parent=1 // pred_region
      %s276 = ssub.s32 16, 16
      %277 = vsyncadd [#allocation3], %s276
      %280 = dma.smem_to_hbm [#allocation2], 16, %s4, [#allocation3]
    $region29: #{tpu_custom_call.1} parent=1 // pred_fallthru
      _
    // Predicated region
    $region30: #{tpu_custom_call.1} parent=1 // pred_check
      _
    $region31: #{tpu_custom_call.1} parent=1 // pred_check_branch
      %282 = sbr.rel (0) target = $region33
    $region32: #{tpu_custom_call.1} parent=1 // pred_region
      %s284 = ssub.s32 16, 16
      %285 = vsyncadd [#allocation5], %s284
      %288 = dma.smem_to_hbm [#allocation4], 16, %s5, [#allocation5]
    $region33: #{tpu_custom_call.1} parent=1 // pred_fallthru
      _
    // Predicated region
    $region34: #{tpu_custom_call.1} parent=1 // pred_check
      _
    $region35: #{tpu_custom_call.1} parent=1 // pred_check_branch
      %290 = sbr.rel (0) target = $region37
    $region36: #{tpu_custom_call.1} parent=1 // pred_region
      %291 = dma.done [#allocation3], 16
    $region37: #{tpu_custom_call.1} parent=1 // pred_fallthru
      _
    // Predicated region
    $region38: #{tpu_custom_call.1} parent=1 // pred_check
      _
    $region39: #{tpu_custom_call.1} parent=1 // pred_check_branch
      %293 = sbr.rel (0) target = $region41
    $region40: #{tpu_custom_call.1} parent=1 // pred_region
      %294 = dma.done [#allocation5], 16
    $region41: #{tpu_custom_call.1} parent=1 // pred_fallthru
      _
    %295 = sfence
    %296 = vsyncpa [#allocation3], 1
    %297 = vsyncpa [#allocation5], 1

</llo_original>
